<compile_context>
chip_gen: v7x
topology: tpu7x:2x2x1
jax: 0.10.0
libtpu: 0.0.40
codegen_flags: <defaults>
</compile_context>

<pallas_src>
from functools import partial

import jax
import jax.numpy as jnp
from jax.experimental import pallas as pl
from jax.experimental.pallas import tpu as pltpu


# ----------------------------------------------------------------------------
# Kernel
# ----------------------------------------------------------------------------
def _critic_double_kernel(n_hidden, *refs):
    """refs = [state, action, Ws0, Wa0, b0, (Wbd, b)*n_hidden, Wlast, blast, q_out].

    First layer is split over state/action rows (replaces the concat).  Hidden layers
    use block-diagonal stacked weights so both critics advance in one matmul.  ReLU on
    every layer except the last, matching Critic_Double.forward.  Output is (tile, 2)
    with columns [q1, q2].
    """
    s_ref, a_ref, ws_ref, wa_ref, b0_ref = refs[:5]
    p = 5
    hidden = refs[p:p + 2 * n_hidden]
    p += 2 * n_hidden
    wl_ref, bl_ref, q_ref = refs[p], refs[p + 1], refs[p + 2]

    # Layer 0: split matmul over the state / action halves of the (stacked) input weight.
    h = (jnp.dot(s_ref[...], ws_ref[...], preferred_element_type=jnp.float32)
         + jnp.dot(a_ref[...], wa_ref[...], preferred_element_type=jnp.float32)
         + b0_ref[...])
    h = jnp.maximum(h, 0.0)

    # Hidden layers (block-diagonal stacked weights, one MXU push for both critics).
    for li in range(n_hidden):
        w = hidden[2 * li][...]
        b = hidden[2 * li + 1][...]
        h = jnp.maximum(
            jnp.dot(h, w, preferred_element_type=jnp.float32) + b, 0.0)

    # Output layer: (2H, 2) -> dense (tile, 2) store of [q1 | q2]; no ReLU.
    q = jnp.dot(h, wl_ref[...], preferred_element_type=jnp.float32) + bl_ref[...]
    q_ref[...] = q.astype(q_ref.dtype)


# ----------------------------------------------------------------------------
# Parameter stacking (done once in the wrapper; pure layout plumbing)
# ----------------------------------------------------------------------------
def _stack_params(params1, params2, state_dim):
    """Pack two independent critic heads into block-diagonal stacked weights."""
    # First layer: columns concatenated -> (S+A, 2*H0); split rows into state/action parts.
    w1_0, b1_0 = params1[0]
    w2_0, b2_0 = params2[0]
    w0 = jnp.concatenate([w1_0, w2_0], axis=1)
    b0 = jnp.concatenate([b1_0, b2_0], axis=1)
    ws, wa = w0[:state_dim], w0[state_dim:]

    # Hidden layers: block-diagonal (2*H_in, 2*H_out), biases concatenated.
    hidden = []
    for (w1, b1), (w2, b2) in zip(params1[1:-1], params2[1:-1]):
        n_in, n_out = w1.shape
        wbd = jnp.zeros((2 * n_in, 2 * n_out), w1.dtype)
        wbd = wbd.at[:n_in, :n_out].set(w1)
        wbd = wbd.at[n_in:, n_out:].set(w2)
        hidden.append((wbd, jnp.concatenate([b1, b2], axis=1)))

    # Output layer: (2*H, 2); critic 1 feeds column 0, critic 2 feeds column 1.
    w1_l, b1_l = params1[-1]
    w2_l, b2_l = params2[-1]
    n_in = w1_l.shape[0]
    wl = jnp.zeros((2 * n_in, 2), w1_l.dtype)
    wl = wl.at[:n_in, 0:1].set(w1_l)
    wl = wl.at[n_in:, 1:2].set(w2_l)
    bl = jnp.concatenate([b1_l, b2_l], axis=1)

    return ws, wa, b0, hidden, wl, bl


# ----------------------------------------------------------------------------
# Wrapper
# ----------------------------------------------------------------------------
def critic_double_forward(state, action, params1, params2, *, max_tile_b=512):
    """Pallas equivalent of Critic_Double.forward(state, action) -> (q1, q2)."""
    state = state.astype(jnp.float32)
    action = action.astype(jnp.float32)
    batch, state_dim = state.shape
    _, action_dim = action.shape
    n_layers = len(params1)
    assert len(params2) == n_layers and n_layers >= 2
    n_hidden = n_layers - 2

    ws, wa, b0, hidden, wl, bl = _stack_params(params1, params2, state_dim)

    # Batch tiling: single block for small batches, 512-row tiles otherwise
    # (Pallas masks the partial edge block if batch isn't a multiple of the tile).
    tb = batch if batch <= max_tile_b else max_tile_b
    grid = (pl.cdiv(batch, tb),)

    row_map = lambda i: (i, 0)   # activation / output tiles walk the batch axis
    const_map = lambda i: (0, 0)  # weights & biases resident across grid steps

    in_specs = [
        pl.BlockSpec((tb, state_dim), row_map),
        pl.BlockSpec((tb, action_dim), row_map),
        pl.BlockSpec(ws.shape, const_map),
        pl.BlockSpec(wa.shape, const_map),
        pl.BlockSpec(b0.shape, const_map),
    ]
    flat = [state, action, ws, wa, b0]
    for w, b in hidden:
        in_specs += [pl.BlockSpec(w.shape, const_map),
                     pl.BlockSpec(b.shape, const_map)]
        flat += [w, b]
    in_specs += [pl.BlockSpec(wl.shape, const_map),
                 pl.BlockSpec(bl.shape, const_map)]
    flat += [wl, bl]

    q = pl.pallas_call(
        partial(_critic_double_kernel, n_hidden),
        out_shape=jax.ShapeDtypeStruct((batch, 2), jnp.float32),
        grid=grid,
        in_specs=in_specs,
        out_specs=pl.BlockSpec((tb, 2), row_map),
        compiler_params=pltpu.CompilerParams(
            dimension_semantics=("parallel",),   # shards across 2 TCs on v7x
            vmem_limit_bytes=64 << 20,
        ),
    )(*flat)

    # Wrapper-side split of the dense (B, 2) output is free layout plumbing.
    return q[:, 0:1], q[:, 1:2]


# ----------------------------------------------------------------------------
# Deterministic parameter construction (mirrors the nn.Linear shapes in __init__)
# ----------------------------------------------------------------------------
def _init_linear(key, n_in, n_out, init_w=None):
    kw, kb = jax.random.split(key)
    bound = (1.0 / jnp.sqrt(jnp.float32(n_in))) if init_w is None else jnp.float32(init_w)
    w = jax.random.uniform(kw, (n_in, n_out), jnp.float32, -bound, bound)
    b = jax.random.uniform(kb, (1, n_out), jnp.float32, -bound, bound)
    return w, b


def make_critic_params(key, state_dim, action_dim, layer_info, init_w):
    """One critic head: input_layer, layers (from layer_info), output_layer."""
    keys = jax.random.split(key, len(layer_info) + 2)
    params = [_init_linear(keys[0], state_dim + action_dim, layer_info[0][0])]
    for i, (n_in, n_out) in enumerate(layer_info):
        params.append(_init_linear(keys[i + 1], n_in, n_out))
    params.append(_init_linear(keys[-1], layer_info[-1][1], 1, init_w=init_w))
    return params


def reference_forward(state, action, params1, params2):
    """Plain-JAX reference (separate critics, explicit concat) for correctness checking."""
    x = jnp.concatenate([state, action], axis=1)

    def mlp(params):
        h = x
        for i, (w, b) in enumerate(params):
            h = h @ w + b
            if i < len(params) - 1:
                h = jnp.maximum(h, 0.0)
        return h

    return mlp(params1), mlp(params2)


# ----------------------------------------------------------------------------
if __name__ == "__main__":
    # Small MuJoCo-like config
    state_dim, action_dim = 12, 4
    layer_info = [(32, 32), (32, 32)]   # config.layer_info
    init_w = 3e-3                       # config.init_w
    batch = 2

    root = jax.random.PRNGKey(0)
    k_s, k_a, k_p1, k_p2 = jax.random.split(root, 4)

    state = jax.random.normal(k_s, (batch, state_dim), jnp.float32)
    action = jax.random.normal(k_a, (batch, action_dim), jnp.float32)

    params1 = make_critic_params(k_p1, state_dim, action_dim, layer_info, init_w)
    params2 = make_critic_params(k_p2, state_dim, action_dim, layer_info, init_w)

    q1, q2 = critic_double_forward(state, action, params1, params2)
    jax.block_until_ready((q1, q2))

    # sanity check against pure-JAX reference
    q1_ref, q2_ref = reference_forward(state, action, params1, params2)
    assert q1.shape == (batch, 1) and q2.shape == (batch, 1)
    assert jnp.allclose(q1, q1_ref, atol=1e-5, rtol=1e-5)
    assert jnp.allclose(q2, q2_ref, atol=1e-5, rtol=1e-5)

    print("KERNEL_OK")
</pallas_src>

<mosaic_0001>
module attributes {stable_mosaic.version = 11 : i64} {
  func.func @_critic_double_kernel(%arg0: i32, %arg1: memref<2x12xf32, #tpu.memory_space<vmem>>, %arg2: memref<2x4xf32, #tpu.memory_space<vmem>>, %arg3: memref<12x64xf32, #tpu.memory_space<vmem>>, %arg4: memref<4x64xf32, #tpu.memory_space<vmem>>, %arg5: memref<1x64xf32, #tpu.memory_space<vmem>>, %arg6: memref<64x64xf32, #tpu.memory_space<vmem>>, %arg7: memref<1x64xf32, #tpu.memory_space<vmem>>, %arg8: memref<64x64xf32, #tpu.memory_space<vmem>>, %arg9: memref<1x64xf32, #tpu.memory_space<vmem>>, %arg10: memref<64x2xf32, #tpu.memory_space<vmem>>, %arg11: memref<1x2xf32, #tpu.memory_space<vmem>>, %arg12: memref<2x2xf32, #tpu.memory_space<vmem>>) attributes {dimension_semantics = [#tpu.dimension_semantics<parallel>], iteration_bounds = array<i64: 1>, scalar_prefetch = 0 : i64, scratch_operands = 0 : i64, tpu.core_type = #tpu.core_type<tc>, window_params = [{transform_indices = @transform_0, window_bounds = array<i64: 2, 12>}, {transform_indices = @transform_1, window_bounds = array<i64: 2, 4>}, {pipeline_mode = #tpu.pipeline_mode<synchronous>, transform_indices = @transform_2, window_bounds = array<i64: 12, 64>}, {pipeline_mode = #tpu.pipeline_mode<synchronous>, transform_indices = @transform_3, window_bounds = array<i64: 4, 64>}, {pipeline_mode = #tpu.pipeline_mode<synchronous>, transform_indices = @transform_4, window_bounds = array<i64: 1, 64>}, {pipeline_mode = #tpu.pipeline_mode<synchronous>, transform_indices = @transform_5, window_bounds = array<i64: 64, 64>}, {pipeline_mode = #tpu.pipeline_mode<synchronous>, transform_indices = @transform_6, window_bounds = array<i64: 1, 64>}, {pipeline_mode = #tpu.pipeline_mode<synchronous>, transform_indices = @transform_7, window_bounds = array<i64: 64, 64>}, {pipeline_mode = #tpu.pipeline_mode<synchronous>, transform_indices = @transform_8, window_bounds = array<i64: 1, 64>}, {pipeline_mode = #tpu.pipeline_mode<synchronous>, transform_indices = @transform_9, window_bounds = array<i64: 64, 2>}, {pipeline_mode = #tpu.pipeline_mode<synchronous>, transform_indices = @transform_10, window_bounds = array<i64: 1, 2>}, {transform_indices = @transform_11, window_bounds = array<i64: 2, 2>}]} {
    %c0 = arith.constant 0 : index
    %c0_0 = arith.constant 0 : index
    %0 = vector.load %arg1[%c0, %c0_0] : memref<2x12xf32, #tpu.memory_space<vmem>>, vector<2x12xf32>
    %c0_1 = arith.constant 0 : index
    %c0_2 = arith.constant 0 : index
    %1 = vector.load %arg3[%c0_1, %c0_2] : memref<12x64xf32, #tpu.memory_space<vmem>>, vector<12x64xf32>
    %cst = arith.constant dense<0.000000e+00> : vector<2x64xf32>
    %2 = tpu.matmul %0, %1, %cst {dimension_numbers = #tpu.dot_dimension_numbers<[1], [0], [0], [1], [0, 0, 1, 1], [], []>} : vector<2x12xf32>, vector<12x64xf32>, vector<2x64xf32> -> vector<2x64xf32>
    %c0_3 = arith.constant 0 : index
    %c0_4 = arith.constant 0 : index
    %3 = vector.load %arg2[%c0_3, %c0_4] : memref<2x4xf32, #tpu.memory_space<vmem>>, vector<2x4xf32>
    %c0_5 = arith.constant 0 : index
    %c0_6 = arith.constant 0 : index
    %4 = vector.load %arg4[%c0_5, %c0_6] : memref<4x64xf32, #tpu.memory_space<vmem>>, vector<4x64xf32>
    %cst_7 = arith.constant dense<0.000000e+00> : vector<2x64xf32>
    %5 = tpu.matmul %3, %4, %cst_7 {dimension_numbers = #tpu.dot_dimension_numbers<[1], [0], [0], [1], [0, 0, 1, 1], [], []>} : vector<2x4xf32>, vector<4x64xf32>, vector<2x64xf32> -> vector<2x64xf32>
    %6 = arith.addf %2, %5 : vector<2x64xf32>
    %c0_8 = arith.constant 0 : index
    %c0_9 = arith.constant 0 : index
    %7 = vector.load %arg5[%c0_8, %c0_9] : memref<1x64xf32, #tpu.memory_space<vmem>>, vector<1x64xf32>
    %8 = vector.broadcast %7 : vector<1x64xf32> to vector<2x64xf32>
    %9 = arith.addf %6, %8 : vector<2x64xf32>
    %cst_10 = arith.constant 0.000000e+00 : f32
    %10 = vector.broadcast %cst_10 : f32 to vector<2x64xf32>
    %11 = arith.maximumf %9, %10 : vector<2x64xf32>
    %c0_11 = arith.constant 0 : index
    %c0_12 = arith.constant 0 : index
    %12 = vector.load %arg6[%c0_11, %c0_12] : memref<64x64xf32, #tpu.memory_space<vmem>>, vector<64x64xf32>
    %c0_13 = arith.constant 0 : index
    %c0_14 = arith.constant 0 : index
    %13 = vector.load %arg7[%c0_13, %c0_14] : memref<1x64xf32, #tpu.memory_space<vmem>>, vector<1x64xf32>
    %cst_15 = arith.constant dense<0.000000e+00> : vector<2x64xf32>
    %14 = tpu.matmul %11, %12, %cst_15 {dimension_numbers = #tpu.dot_dimension_numbers<[1], [0], [0], [1], [0, 0, 1, 1], [], []>} : vector<2x64xf32>, vector<64x64xf32>, vector<2x64xf32> -> vector<2x64xf32>
    %15 = vector.broadcast %13 : vector<1x64xf32> to vector<2x64xf32>
    %16 = arith.addf %14, %15 : vector<2x64xf32>
    %cst_16 = arith.constant 0.000000e+00 : f32
    %17 = vector.broadcast %cst_16 : f32 to vector<2x64xf32>
    %18 = arith.maximumf %16, %17 : vector<2x64xf32>
    %c0_17 = arith.constant 0 : index
    %c0_18 = arith.constant 0 : index
    %19 = vector.load %arg8[%c0_17, %c0_18] : memref<64x64xf32, #tpu.memory_space<vmem>>, vector<64x64xf32>
    %c0_19 = arith.constant 0 : index
    %c0_20 = arith.constant 0 : index
    %20 = vector.load %arg9[%c0_19, %c0_20] : memref<1x64xf32, #tpu.memory_space<vmem>>, vector<1x64xf32>
    %cst_21 = arith.constant dense<0.000000e+00> : vector<2x64xf32>
    %21 = tpu.matmul %18, %19, %cst_21 {dimension_numbers = #tpu.dot_dimension_numbers<[1], [0], [0], [1], [0, 0, 1, 1], [], []>} : vector<2x64xf32>, vector<64x64xf32>, vector<2x64xf32> -> vector<2x64xf32>
    %22 = vector.broadcast %20 : vector<1x64xf32> to vector<2x64xf32>
    %23 = arith.addf %21, %22 : vector<2x64xf32>
    %cst_22 = arith.constant 0.000000e+00 : f32
    %24 = vector.broadcast %cst_22 : f32 to vector<2x64xf32>
    %25 = arith.maximumf %23, %24 : vector<2x64xf32>
    %c0_23 = arith.constant 0 : index
    %c0_24 = arith.constant 0 : index
    %26 = vector.load %arg10[%c0_23, %c0_24] : memref<64x2xf32, #tpu.memory_space<vmem>>, vector<64x2xf32>
    %cst_25 = arith.constant dense<0.000000e+00> : vector<2x2xf32>
    %27 = tpu.matmul %25, %26, %cst_25 {dimension_numbers = #tpu.dot_dimension_numbers<[1], [0], [0], [1], [0, 0, 1, 1], [], []>} : vector<2x64xf32>, vector<64x2xf32>, vector<2x2xf32> -> vector<2x2xf32>
    %c0_26 = arith.constant 0 : index
    %c0_27 = arith.constant 0 : index
    %28 = vector.load %arg11[%c0_26, %c0_27] : memref<1x2xf32, #tpu.memory_space<vmem>>, vector<1x2xf32>
    %29 = vector.broadcast %28 : vector<1x2xf32> to vector<2x2xf32>
    %30 = arith.addf %27, %29 : vector<2x2xf32>
    %c0_28 = arith.constant 0 : index
    %c0_29 = arith.constant 0 : index
    %31 = vector.load %arg12[%c0_28, %c0_29] : memref<2x2xf32, #tpu.memory_space<vmem>>, vector<2x2xf32>
    tpu.vector_store %arg12[%c0_28, %c0_29], %30 {strides = array<i32>} : memref<2x2xf32, #tpu.memory_space<vmem>>, vector<2x2xf32>,
    return
  }
  func.func @transform_0(%arg0: i32) -> (i32, i32) {
    %c0_i32 = arith.constant 0 : i32
    %c0_i32_0 = arith.constant 0 : i32
    return %arg0, %c0_i32 : i32, i32
  }
  func.func @transform_1(%arg0: i32) -> (i32, i32) {
    %c0_i32 = arith.constant 0 : i32
    %c0_i32_0 = arith.constant 0 : i32
    return %arg0, %c0_i32 : i32, i32
  }
  func.func @transform_2(%arg0: i32) -> (i32, i32) {
    %c0_i32 = arith.constant 0 : i32
    %c0_i32_0 = arith.constant 0 : i32
    %c0_i32_1 = arith.constant 0 : i32
    return %c0_i32, %c0_i32_0 : i32, i32
  }
  func.func @transform_3(%arg0: i32) -> (i32, i32) {
    %c0_i32 = arith.constant 0 : i32
    %c0_i32_0 = arith.constant 0 : i32
    %c0_i32_1 = arith.constant 0 : i32
    return %c0_i32, %c0_i32_0 : i32, i32
  }
  func.func @transform_4(%arg0: i32) -> (i32, i32) {
    %c0_i32 = arith.constant 0 : i32
    %c0_i32_0 = arith.constant 0 : i32
    %c0_i32_1 = arith.constant 0 : i32
    return %c0_i32, %c0_i32_0 : i32, i32
  }
  func.func @transform_5(%arg0: i32) -> (i32, i32) {
    %c0_i32 = arith.constant 0 : i32
    %c0_i32_0 = arith.constant 0 : i32
    %c0_i32_1 = arith.constant 0 : i32
    return %c0_i32, %c0_i32_0 : i32, i32
  }
  func.func @transform_6(%arg0: i32) -> (i32, i32) {
    %c0_i32 = arith.constant 0 : i32
    %c0_i32_0 = arith.constant 0 : i32
    %c0_i32_1 = arith.constant 0 : i32
    return %c0_i32, %c0_i32_0 : i32, i32
  }
  func.func @transform_7(%arg0: i32) -> (i32, i32) {
    %c0_i32 = arith.constant 0 : i32
    %c0_i32_0 = arith.constant 0 : i32
    %c0_i32_1 = arith.constant 0 : i32
    return %c0_i32, %c0_i32_0 : i32, i32
  }
  func.func @transform_8(%arg0: i32) -> (i32, i32) {
    %c0_i32 = arith.constant 0 : i32
    %c0_i32_0 = arith.constant 0 : i32
    %c0_i32_1 = arith.constant 0 : i32
    return %c0_i32, %c0_i32_0 : i32, i32
  }
  func.func @transform_9(%arg0: i32) -> (i32, i32) {
    %c0_i32 = arith.constant 0 : i32
    %c0_i32_0 = arith.constant 0 : i32
    %c0_i32_1 = arith.constant 0 : i32
    return %c0_i32, %c0_i32_0 : i32, i32
  }
  func.func @transform_10(%arg0: i32) -> (i32, i32) {
    %c0_i32 = arith.constant 0 : i32
    %c0_i32_0 = arith.constant 0 : i32
    %c0_i32_1 = arith.constant 0 : i32
    return %c0_i32, %c0_i32_0 : i32, i32
  }
  func.func @transform_11(%arg0: i32) -> (i32, i32) {
    %c0_i32 = arith.constant 0 : i32
    %c0_i32_0 = arith.constant 0 : i32
    return %arg0, %c0_i32 : i32, i32
  }
}

</mosaic_0001>

<llo_original>
// kernel: tpu_custom_call.1
$region0: #{tpu_custom_call.1}
  #allocation0 [shape = 'u32[]', space=smem, size = 0x4, offset = 0x4, fixed_abs, tag = 'smem constant byte address 0x4 - core index']
  #allocation1 [shape = 'u32[144,128]{1,0:T(1,128)}', space=vmem, size = 0x12000, scoped, tag = 'internal scratch']
  %s0 = inlined_call_operand.hbm [shape: f32[2,12], index: 0, kind: input, shape index: {}]
  %s1 = inlined_call_operand.hbm [shape: f32[2,4], index: 1, kind: input, shape index: {}]
  %s2 = inlined_call_operand.hbm [shape: f32[12,64], index: 2, kind: input, shape index: {}]
  %s3 = inlined_call_operand.hbm [shape: f32[4,64], index: 3, kind: input, shape index: {}]
  %s4 = inlined_call_operand.hbm [shape: f32[1,64], index: 4, kind: input, shape index: {}]
  %s5 = inlined_call_operand.hbm [shape: f32[64,64], index: 5, kind: input, shape index: {}]
  %s6 = inlined_call_operand.hbm [shape: f32[1,64], index: 6, kind: input, shape index: {}]
  %s7 = inlined_call_operand.hbm [shape: f32[64,64], index: 7, kind: input, shape index: {}]
  %s8 = inlined_call_operand.hbm [shape: f32[1,64], index: 8, kind: input, shape index: {}]
  %s9 = inlined_call_operand.hbm [shape: f32[64,2], index: 9, kind: input, shape index: {}]
  %s10 = inlined_call_operand.hbm [shape: f32[1,2], index: 10, kind: input, shape index: {}]
  %s11 = inlined_call_operand.hbm [shape: f32[2,2], index: 11, kind: output, shape index: {}]
  %s12 = sld [smem:[#allocation0]]
  $region98: #{tpu_custom_call.1} parent=0
    _
  %s14 = ssub.s32 1, %s12
  %s15 = scalar_select 0, %s14, %s12
  $region1: #{tpu_custom_call.1} parent=0
    #allocation2 [shape = 'u8[1024]{0}', space=vmem, size = 0x400, scoped, tag = 'input window, operand 0, single buffered']
    #allocation3 [shape = 's32[1]{0}', space=sflag, size = 0x4, scoped, tag = 'scoped memory for tpu_custom_call.1']
    #allocation4 [shape = 's32[1]{0}', space=sflag, size = 0x4, scoped, tag = 'scoped memory for tpu_custom_call.1']
    #allocation5 [shape = 'u8[1024]{0}', space=vmem, size = 0x400, scoped, tag = 'input window, operand 1, single buffered']
    #allocation6 [shape = 's32[1]{0}', space=sflag, size = 0x4, scoped, tag = 'scoped memory for tpu_custom_call.1']
    #allocation7 [shape = 'u8[8192]{0}', space=vmem, size = 0x2000, scoped, tag = 'input window, operand 2, single buffered']
    #allocation8 [shape = 'u8[2048]{0}', space=vmem, size = 0x800, scoped, tag = 'input window, operand 3, single buffered']
    #allocation9 [shape = 's32[1]{0}', space=sflag, size = 0x4, scoped, tag = 'scoped memory for tpu_custom_call.1']
    #allocation10 [shape = 'u8[512]{0}', space=vmem, size = 0x400, scoped, tag = 'input window, operand 4, single buffered']
    #allocation11 [shape = 'u8[32768]{0}', space=vmem, size = 0x8000, scoped, tag = 'input window, operand 5, single buffered']
    #allocation12 [shape = 's32[1]{0}', space=sflag, size = 0x4, scoped, tag = 'scoped memory for tpu_custom_call.1']
    #allocation13 [shape = 'u8[512]{0}', space=vmem, size = 0x400, scoped, tag = 'input window, operand 6, single buffered']
    #allocation14 [shape = 'u8[32768]{0}', space=vmem, size = 0x8000, scoped, tag = 'input window, operand 7, single buffered']
    #allocation15 [shape = 's32[1]{0}', space=sflag, size = 0x4, scoped, tag = 'scoped memory for tpu_custom_call.1']
    #allocation16 [shape = 'u8[512]{0}', space=vmem, size = 0x400, scoped, tag = 'input window, operand 8, single buffered']
    #allocation17 [shape = 'u8[32768]{0}', space=vmem, size = 0x8000, scoped, tag = 'input window, operand 9, single buffered']
    #allocation18 [shape = 's32[1]{0}', space=sflag, size = 0x4, scoped, tag = 'scoped memory for tpu_custom_call.1']
    #allocation19 [shape = 'u8[512]{0}', space=vmem, size = 0x400, scoped, tag = 'input window, operand 10, single buffered']
    #allocation20 [shape = 'u8[1024]{0}', space=vmem, size = 0x400, scoped, tag = 'output window, operand 0, single buffered']
    %16 = vsyncpa [#allocation3], 0
    %17 = vsyncpa [#allocation6], 0
    %18 = vsyncpa [#allocation9], 0
    %19 = vsyncpa [#allocation12], 0
    %20 = vsyncpa [#allocation15], 0
    %21 = vsyncpa [#allocation18], 0
    %22 = vsyncpa [#allocation4], 0
    // Predicated region
    $region2: #{tpu_custom_call.1} parent=1 // pred_check
      _
    $region3: #{tpu_custom_call.1} parent=1 // pred_check_branch
      %24 = sbr.rel (0) target = $region5
    $region4: #{tpu_custom_call.1} parent=1 // pred_region
      %s26 = ssub.s32 32, 32
      %27 = vsyncadd [#allocation3], %s26
      %s29 = sshll.u32 [#allocation2], 4
      %s30 = int_to_ptr.vmem [resolvable:$true] %s29
      %32 = dma.hbm_to_vmem [thread:$0]  %s0, 32, %s30, [#allocation3]
    $region5: #{tpu_custom_call.1} parent=1 // pred_fallthru
      _
    // Predicated region
    $region6: #{tpu_custom_call.1} parent=1 // pred_check
      _
    $region7: #{tpu_custom_call.1} parent=1 // pred_check_branch
      %34 = sbr.rel (0) target = $region9
    $region8: #{tpu_custom_call.1} parent=1 // pred_region
      %s36 = ssub.s32 32, 32
      %37 = vsyncadd [#allocation6], %s36
      %s39 = sshll.u32 [#allocation5], 4
      %s40 = int_to_ptr.vmem [resolvable:$true] %s39
      %42 = dma.hbm_to_vmem [thread:$0]  %s1, 32, %s40, [#allocation6]
    $region9: #{tpu_custom_call.1} parent=1 // pred_fallthru
      _
    // Predicated region
    $region10: #{tpu_custom_call.1} parent=1 // pred_check
      _
    $region11: #{tpu_custom_call.1} parent=1 // pred_check_branch
      %44 = sbr.rel (0) target = $region13
    $region12: #{tpu_custom_call.1} parent=1 // pred_region
      %s46 = ssub.s32 256, 256
      %47 = vsyncadd [#allocation6], %s46
      %s48 = sshll.u32 [#allocation7], 4
      %s49 = int_to_ptr.vmem [resolvable:$true] %s48
      %54 = dma.hbm_to_vmem [thread:$0]  %s2, 256, %s49, [#allocation6], 128, 128, 8
    $region13: #{tpu_custom_call.1} parent=1 // pred_fallthru
      _
    // Predicated region
    $region14: #{tpu_custom_call.1} parent=1 // pred_check
      _
    $region15: #{tpu_custom_call.1} parent=1 // pred_check_branch
      %56 = sbr.rel (0) target = $region17
    $region16: #{tpu_custom_call.1} parent=1 // pred_region
      %s58 = ssub.s32 64, 64
      %59 = vsyncadd [#allocation9], %s58
      %s61 = sshll.u32 [#allocation8], 4
      %s62 = int_to_ptr.vmem [resolvable:$true] %s61
      %64 = dma.hbm_to_vmem [thread:$0]  %s3, 64, %s62, [#allocation9]
    $region17: #{tpu_custom_call.1} parent=1 // pred_fallthru
      _
    // Predicated region
    $region18: #{tpu_custom_call.1} parent=1 // pred_check
      _
    $region19: #{tpu_custom_call.1} parent=1 // pred_check_branch
      %66 = sbr.rel (0) target = $region21
    $region20: #{tpu_custom_call.1} parent=1 // pred_region
      %s68 = ssub.s32 16, 16
      %69 = vsyncadd [#allocation9], %s68
      %s71 = sshll.u32 [#allocation10], 4
      %s72 = int_to_ptr.vmem [resolvable:$true] %s71
      %74 = dma.hbm_to_vmem [thread:$0]  %s4, 16, %s72, [#allocation9]
    $region21: #{tpu_custom_call.1} parent=1 // pred_fallthru
      _
    // Predicated region
    $region22: #{tpu_custom_call.1} parent=1 // pred_check
      _
    $region23: #{tpu_custom_call.1} parent=1 // pred_check_branch
      %76 = sbr.rel (0) target = $region25
    $region24: #{tpu_custom_call.1} parent=1 // pred_region
      %s78 = ssub.s32 1024, 1024
      %79 = vsyncadd [#allocation12], %s78
      %s80 = sshll.u32 [#allocation11], 4
      %s81 = int_to_ptr.vmem [resolvable:$true] %s80
      %86 = dma.hbm_to_vmem [thread:$0]  %s5, 1024, %s81, [#allocation12], 128, 128, 8
    $region25: #{tpu_custom_call.1} parent=1 // pred_fallthru
      _
    // Predicated region
    $region26: #{tpu_custom_call.1} parent=1 // pred_check
      _
    $region27: #{tpu_custom_call.1} parent=1 // pred_check_branch
      %88 = sbr.rel (0) target = $region29
    $region28: #{tpu_custom_call.1} parent=1 // pred_region
      %s90 = ssub.s32 16, 16
      %91 = vsyncadd [#allocation12], %s90
      %s93 = sshll.u32 [#allocation13], 4
      %s94 = int_to_ptr.vmem [resolvable:$true] %s93
      %96 = dma.hbm_to_vmem [thread:$0]  %s6, 16, %s94, [#allocation12]
    $region29: #{tpu_custom_call.1} parent=1 // pred_fallthru
      _
    // Predicated region
    $region30: #{tpu_custom_call.1} parent=1 // pred_check
      _
    $region31: #{tpu_custom_call.1} parent=1 // pred_check_branch
      %98 = sbr.rel (0) target = $region33
    $region32: #{tpu_custom_call.1} parent=1 // pred_region
      %s100 = ssub.s32 1024, 1024
      %101 = vsyncadd [#allocation15], %s100
      %s102 = sshll.u32 [#allocation14], 4
      %s103 = int_to_ptr.vmem [resolvable:$true] %s102
      %108 = dma.hbm_to_vmem [thread:$0]  %s7, 1024, %s103, [#allocation15], 128, 128, 8
    $region33: #{tpu_custom_call.1} parent=1 // pred_fallthru
      _
    // Predicated region
    $region34: #{tpu_custom_call.1} parent=1 // pred_check
      _
    $region35: #{tpu_custom_call.1} parent=1 // pred_check_branch
      %110 = sbr.rel (0) target = $region37
    $region36: #{tpu_custom_call.1} parent=1 // pred_region
      %s112 = ssub.s32 16, 16
      %113 = vsyncadd [#allocation15], %s112
      %s115 = sshll.u32 [#allocation16], 4
      %s116 = int_to_ptr.vmem [resolvable:$true] %s115
      %118 = dma.hbm_to_vmem [thread:$0]  %s8, 16, %s116, [#allocation15]
    $region37: #{tpu_custom_call.1} parent=1 // pred_fallthru
      _
    // Predicated region
    $region38: #{tpu_custom_call.1} parent=1 // pred_check
      _
    $region39: #{tpu_custom_call.1} parent=1 // pred_check_branch
      %120 = sbr.rel (0) target = $region41
    $region40: #{tpu_custom_call.1} parent=1 // pred_region
      %s122 = ssub.s32 1024, 1024
      %123 = vsyncadd [#allocation18], %s122
      %s124 = sshll.u32 [#allocation17], 4
      %s125 = int_to_ptr.vmem [resolvable:$true] %s124
      %130 = dma.hbm_to_vmem [thread:$0]  %s9, 1024, %s125, [#allocation18], 128, 128, 8
    $region41: #{tpu_custom_call.1} parent=1 // pred_fallthru
      _
    // Predicated region
    $region42: #{tpu_custom_call.1} parent=1 // pred_check
      _
    $region43: #{tpu_custom_call.1} parent=1 // pred_check_branch
      %132 = sbr.rel (0) target = $region45
    $region44: #{tpu_custom_call.1} parent=1 // pred_region
      %s134 = ssub.s32 16, 16
      %135 = vsyncadd [#allocation18], %s134
      %s137 = sshll.u32 [#allocation19], 4
      %s138 = int_to_ptr.vmem [resolvable:$true] %s137
      %140 = dma.hbm_to_vmem [thread:$0]  %s10, 16, %s138, [#allocation18]
    $region45: #{tpu_custom_call.1} parent=1 // pred_fallthru
      _
    // Predicated region
    $region46: #{tpu_custom_call.1} parent=1 // pred_check
      _
    $region47: #{tpu_custom_call.1} parent=1 // pred_check_branch
      %142 = sbr.rel (0) target = $region49
    $region48: #{tpu_custom_call.1} parent=1 // pred_region
      %143 = dma.done [#allocation3], 32
    $region49: #{tpu_custom_call.1} parent=1 // pred_fallthru
      _
    // Predicated region
    $region50: #{tpu_custom_call.1} parent=1 // pred_check
      _
    $region51: #{tpu_custom_call.1} parent=1 // pred_check_branch
      %145 = sbr.rel (0) target = $region53
    $region52: #{tpu_custom_call.1} parent=1 // pred_region
      %146 = dma.done [#allocation6], 32
    $region53: #{tpu_custom_call.1} parent=1 // pred_fallthru
      _
    // Predicated region
    $region54: #{tpu_custom_call.1} parent=1 // pred_check
      _
    $region55: #{tpu_custom_call.1} parent=1 // pred_check_branch
      %148 = sbr.rel (0) target = $region57
    $region56: #{tpu_custom_call.1} parent=1 // pred_region
      %149 = dma.done [#allocation6], 256
    $region57: #{tpu_custom_call.1} parent=1 // pred_fallthru
      _
    // Predicated region
    $region58: #{tpu_custom_call.1} parent=1 // pred_check
      _
    $region59: #{tpu_custom_call.1} parent=1 // pred_check_branch
      %151 = sbr.rel (0) target = $region61
    $region60: #{tpu_custom_call.1} parent=1 // pred_region
      %152 = dma.done [#allocation9], 64
    $region61: #{tpu_custom_call.1} parent=1 // pred_fallthru
      _
    // Predicated region
    $region62: #{tpu_custom_call.1} parent=1 // pred_check
      _
    $region63: #{tpu_custom_call.1} parent=1 // pred_check_branch
      %154 = sbr.rel (0) target = $region65
    $region64: #{tpu_custom_call.1} parent=1 // pred_region
      %155 = dma.done [#allocation9], 16
    $region65: #{tpu_custom_call.1} parent=1 // pred_fallthru
      _
    // Predicated region
    $region66: #{tpu_custom_call.1} parent=1 // pred_check
      _
    $region67: #{tpu_custom_call.1} parent=1 // pred_check_branch
      %157 = sbr.rel (0) target = $region69
    $region68: #{tpu_custom_call.1} parent=1 // pred_region
      %158 = dma.done [#allocation12], 1024
    $region69: #{tpu_custom_call.1} parent=1 // pred_fallthru
      _
    // Predicated region
    $region70: #{tpu_custom_call.1} parent=1 // pred_check
      _
    $region71: #{tpu_custom_call.1} parent=1 // pred_check_branch
      %160 = sbr.rel (0) target = $region73
    $region72: #{tpu_custom_call.1} parent=1 // pred_region
      %161 = dma.done [#allocation12], 16
    $region73: #{tpu_custom_call.1} parent=1 // pred_fallthru
      _
    // Predicated region
    $region74: #{tpu_custom_call.1} parent=1 // pred_check
      _
    $region75: #{tpu_custom_call.1} parent=1 // pred_check_branch
      %163 = sbr.rel (0) target = $region77
    $region76: #{tpu_custom_call.1} parent=1 // pred_region
      %164 = dma.done [#allocation15], 1024
    $region77: #{tpu_custom_call.1} parent=1 // pred_fallthru
      _
    // Predicated region
    $region78: #{tpu_custom_call.1} parent=1 // pred_check
      _
    $region79: #{tpu_custom_call.1} parent=1 // pred_check_branch
      %166 = sbr.rel (0) target = $region81
    $region80: #{tpu_custom_call.1} parent=1 // pred_region
      %167 = dma.done [#allocation15], 16
    $region81: #{tpu_custom_call.1} parent=1 // pred_fallthru
      _
    // Predicated region
    $region82: #{tpu_custom_call.1} parent=1 // pred_check
      _
    $region83: #{tpu_custom_call.1} parent=1 // pred_check_branch
      %169 = sbr.rel (0) target = $region85
    $region84: #{tpu_custom_call.1} parent=1 // pred_region
      %170 = dma.done [#allocation18], 1024
    $region85: #{tpu_custom_call.1} parent=1 // pred_fallthru
      _
    // Predicated region
    $region86: #{tpu_custom_call.1} parent=1 // pred_check
      _
    $region87: #{tpu_custom_call.1} parent=1 // pred_check_branch
      %172 = sbr.rel (0) target = $region89
    $region88: #{tpu_custom_call.1} parent=1 // pred_region
      %173 = dma.done [#allocation18], 16
    $region89: #{tpu_custom_call.1} parent=1 // pred_fallthru
      _
    %v174 = vld [vmem:[#allocation2] sm:$0x3]
    %v175 = vld [vmem:[#allocation7] sm:$0xff]
    %v176 = vld [vmem:[#allocation7 + $0x8] sm:$0xf]
    %v177 = vld [vmem:[#allocation5] sm:$0x3]
    %v178 = vld [vmem:[#allocation8] sm:$0xf]
    %vm179 = vcmask 31744
    %v181 = vsel %vm179, %v177, 0
    %vm183 = vcmask 1043456
    %v185 = vsel %vm183, %v178, 0
    %187 = vmatprep.subr.mxu0 0.0
    %188 = vmatpush1.msra.mxu0 %v185
    %189 = vmatprep.subr.mxu0 0.0
    %190 = vmatpush1.msra.mxu0 0.0
    %191 = vmatprep.subr.mxu0 0.0
    %192 = vmatpush1.msra.mxu0 0.0
    %193 = vmatprep.subr.mxu0 0.0
    %194 = vmatpush1.msra.mxu0 0.0
    %195 = vmatprep.subr.mxu0 0.0
    %196 = vmatpush1.msra.mxu0 0.0
    %197 = vmatprep.subr.mxu0 0.0
    %198 = vmatpush1.msra.mxu0 0.0
    %199 = vmatprep.subr.mxu0 0.0
    %200 = vmatpush1.msra.mxu0 0.0
    %201 = vmatprep.subr.mxu0 0.0
    %202 = vmatpush1.msra.mxu0 0.0
    %203 = vmatprep.subr.mxu0 0.0
    %204 = vmatpush1.msra.mxu0 0.0
    %205 = vmatprep.subr.mxu0 0.0
    %206 = vmatpush1.msra.mxu0 0.0
    %207 = vmatprep.subr.mxu0 0.0
    %208 = vmatpush1.msra.mxu0 0.0
    %209 = vmatprep.subr.mxu0 0.0
    %210 = vmatpush1.msra.mxu0 0.0
    %211 = vmatprep.subr.mxu0 0.0
    %212 = vmatpush1.msra.mxu0 0.0
    %213 = vmatprep.subr.mxu0 0.0
    %214 = vmatpush1.msra.mxu0 0.0
    %215 = vmatprep.subr.mxu0 0.0
    %216 = vmatpush1.msra.mxu0 0.0
    %217 = vmatprep.subr.mxu0 0.0
    %218 = vmatpush1.msra.mxu0 0.0
    %219 = vmatprep.subr.mxu0 0.0
    %220 = vmatpush1.msra.mxu0 0.0
    %221 = vmatprep.subr.mxu0 0.0
    %222 = vmatpush1.msra.mxu0 0.0
    %223 = vmatprep.subr.mxu0 0.0
    %224 = vmatpush1.msra.mxu0 0.0
    %225 = vmatprep.subr.mxu0 0.0
    %226 = vmatpush1.msra.mxu0 0.0
    %227 = vmatprep.subr.mxu0 0.0
    %228 = vmatpush1.msra.mxu0 0.0
    %229 = vmatprep.subr.mxu0 0.0
    %230 = vmatpush1.msra.mxu0 0.0
    %231 = vmatprep.subr.mxu0 0.0
    %232 = vmatpush1.msra.mxu0 0.0
    %233 = vmatprep.subr.mxu0 0.0
    %234 = vmatpush1.msra.mxu0 0.0
    %235 = vmatprep.subr.mxu0 0.0
    %236 = vmatpush1.msra.mxu0 0.0
    %237 = vmatprep.subr.mxu0 0.0
    %238 = vmatpush1.msra.mxu0 0.0
    %239 = vmatprep.subr.mxu0 0.0
    %240 = vmatpush1.msra.mxu0 0.0
    %241 = vmatprep.subr.mxu0 0.0
    %242 = vmatpush1.msra.mxu0 0.0
    %243 = vmatprep.subr.mxu0 0.0
    %244 = vmatpush1.msra.mxu0 0.0
    %245 = vmatprep.subr.mxu0 0.0
    %246 = vmatpush1.msra.mxu0 0.0
    %247 = vmatprep.subr.mxu0 0.0
    %248 = vmatpush1.msra.mxu0 0.0
    %249 = vmatprep.subr.mxu0 0.0
    %250 = vmatpush1.msra.mxu0 0.0
    %251 = vmatprep.mubr.f32.mxu0 0.0
    %252 = vmatmul.mubr.f32.gmra.mrb[0].mxu0 %v181
    %v253 = vpop.f32.mrb[0].mxu0
    %v254 = vadd.f32 0.0, %v253
    %v255 = vpop.f32.mrb[0].mxu0
    %256 = vdwg.mxu0
    %vm257 = vcmask 97280
    %v259 = vsel %vm257, %v174, 0
    %v262 = vsel %vm183, %v176, 0
    %264 = vmatprep.subr.mxu0 0.0
    %265 = vmatpush1.msra.mxu0 %v175
    %266 = vmatprep.subr.mxu0 0.0
    %267 = vmatpush1.msra.mxu0 %v262
    %268 = vmatprep.subr.mxu0 0.0
    %269 = vmatpush1.msra.mxu0 0.0
    %270 = vmatprep.subr.mxu0 0.0
    %271 = vmatpush1.msra.mxu0 0.0
    %272 = vmatprep.subr.mxu0 0.0
    %273 = vmatpush1.msra.mxu0 0.0
    %274 = vmatprep.subr.mxu0 0.0
    %275 = vmatpush1.msra.mxu0 0.0
    %276 = vmatprep.subr.mxu0 0.0
    %277 = vmatpush1.msra.mxu0 0.0
    %278 = vmatprep.subr.mxu0 0.0
    %279 = vmatpush1.msra.mxu0 0.0
    %280 = vmatprep.subr.mxu0 0.0
    %281 = vmatpush1.msra.mxu0 0.0
    %282 = vmatprep.subr.mxu0 0.0
    %283 = vmatpush1.msra.mxu0 0.0
    %284 = vmatprep.subr.mxu0 0.0
    %285 = vmatpush1.msra.mxu0 0.0
    %286 = vmatprep.subr.mxu0 0.0
    %287 = vmatpush1.msra.mxu0 0.0
    %288 = vmatprep.subr.mxu0 0.0
    %289 = vmatpush1.msra.mxu0 0.0
    %290 = vmatprep.subr.mxu0 0.0
    %291 = vmatpush1.msra.mxu0 0.0
    %292 = vmatprep.subr.mxu0 0.0
    %293 = vmatpush1.msra.mxu0 0.0
    %294 = vmatprep.subr.mxu0 0.0
    %295 = vmatpush1.msra.mxu0 0.0
    %296 = vmatprep.subr.mxu0 0.0
    %297 = vmatpush1.msra.mxu0 0.0
    %298 = vmatprep.subr.mxu0 0.0
    %299 = vmatpush1.msra.mxu0 0.0
    %300 = vmatprep.subr.mxu0 0.0
    %301 = vmatpush1.msra.mxu0 0.0
    %302 = vmatprep.subr.mxu0 0.0
    %303 = vmatpush1.msra.mxu0 0.0
    %304 = vmatprep.subr.mxu0 0.0
    %305 = vmatpush1.msra.mxu0 0.0
    %306 = vmatprep.subr.mxu0 0.0
    %307 = vmatpush1.msra.mxu0 0.0
    %308 = vmatprep.subr.mxu0 0.0
    %309 = vmatpush1.msra.mxu0 0.0
    %310 = vmatprep.subr.mxu0 0.0
    %311 = vmatpush1.msra.mxu0 0.0
    %312 = vmatprep.subr.mxu0 0.0
    %313 = vmatpush1.msra.mxu0 0.0
    %314 = vmatprep.subr.mxu0 0.0
    %315 = vmatpush1.msra.mxu0 0.0
    %316 = vmatprep.subr.mxu0 0.0
    %317 = vmatpush1.msra.mxu0 0.0
    %318 = vmatprep.subr.mxu0 0.0
    %319 = vmatpush1.msra.mxu0 0.0
    %320 = vmatprep.subr.mxu0 0.0
    %321 = vmatpush1.msra.mxu0 0.0
    %322 = vmatprep.subr.mxu0 0.0
    %323 = vmatpush1.msra.mxu0 0.0
    %324 = vmatprep.subr.mxu0 0.0
    %325 = vmatpush1.msra.mxu0 0.0
    %326 = vmatprep.subr.mxu0 0.0
    %327 = vmatpush1.msra.mxu0 0.0
    %328 = vmatprep.mubr.f32.mxu0 0.0
    %329 = vmatmul.mubr.f32.gmra.mrb[0].mxu0 %v259
    %v330 = vpop.f32.mrb[0].mxu0
    %v331 = vadd.f32 %v254, %v330
    %v332 = vpop.f32.mrb[0].mxu0
    %333 = vdwg.mxu0
    %v334 = vld [vmem:[#allocation10] sm:$0x1]
    %v336 = vlaneseq
    %v337 = vshrl.u32 %v336, 7
    %v338 = vsub.s32 0, %v337
    %v339 = vrot.slane %v334, %v338
    %v341 = vadd.f32 %v331, %v339
    %v342 = vmax.f32 %v341, 0.0
    %v343 = vld [vmem:[#allocation11] sm:$0xff]
    %v344 = vld [vmem:[#allocation11 + $0x8] sm:$0xff]
    %v345 = vld [vmem:[#allocation11 + $0x10] sm:$0xff]
    %v346 = vld [vmem:[#allocation11 + $0x18] sm:$0xff]
    %v347 = vld [vmem:[#allocation11 + $0x20] sm:$0xff]
    %v348 = vld [vmem:[#allocation11 + $0x28] sm:$0xff]
    %v349 = vld [vmem:[#allocation11 + $0x30] sm:$0xff]
    %v350 = vld [vmem:[#allocation11 + $0x38] sm:$0xff]
    %v351 = vld [vmem:[#allocation13] sm:$0x1]
    %v353 = vlaneseq
    %v354 = vshrl.u32 %v353, 7
    %v355 = vsub.s32 0, %v354
    %v356 = vrot.slane %v351, %v355
    %vm358 = vcmask 523264
    %v360 = vsel %vm358, %v342, 0
    %362 = vmatprep.subr.mxu0 0.0
    %363 = vmatpush1.msra.mxu0 %v343
    %364 = vmatprep.subr.mxu0 0.0
    %365 = vmatpush1.msra.mxu0 %v344
    %366 = vmatprep.subr.mxu0 0.0
    %367 = vmatpush1.msra.mxu0 %v345
    %368 = vmatprep.subr.mxu0 0.0
    %369 = vmatpush1.msra.mxu0 %v346
    %370 = vmatprep.subr.mxu0 0.0
    %371 = vmatpush1.msra.mxu0 %v347
    %372 = vmatprep.subr.mxu0 0.0
    %373 = vmatpush1.msra.mxu0 %v348
    %374 = vmatprep.subr.mxu0 0.0
    %375 = vmatpush1.msra.mxu0 %v349
    %376 = vmatprep.subr.mxu0 0.0
    %377 = vmatpush1.msra.mxu0 %v350
    %378 = vmatprep.subr.mxu0 0.0
    %379 = vmatpush1.msra.mxu0 0.0
    %380 = vmatprep.subr.mxu0 0.0
    %381 = vmatpush1.msra.mxu0 0.0
    %382 = vmatprep.subr.mxu0 0.0
    %383 = vmatpush1.msra.mxu0 0.0
    %384 = vmatprep.subr.mxu0 0.0
    %385 = vmatpush1.msra.mxu0 0.0
    %386 = vmatprep.subr.mxu0 0.0
    %387 = vmatpush1.msra.mxu0 0.0
    %388 = vmatprep.subr.mxu0 0.0
    %389 = vmatpush1.msra.mxu0 0.0
    %390 = vmatprep.subr.mxu0 0.0
    %391 = vmatpush1.msra.mxu0 0.0
    %392 = vmatprep.subr.mxu0 0.0
    %393 = vmatpush1.msra.mxu0 0.0
    %394 = vmatprep.subr.mxu0 0.0
    %395 = vmatpush1.msra.mxu0 0.0
    %396 = vmatprep.subr.mxu0 0.0
    %397 = vmatpush1.msra.mxu0 0.0
    %398 = vmatprep.subr.mxu0 0.0
    %399 = vmatpush1.msra.mxu0 0.0
    %400 = vmatprep.subr.mxu0 0.0
    %401 = vmatpush1.msra.mxu0 0.0
    %402 = vmatprep.subr.mxu0 0.0
    %403 = vmatpush1.msra.mxu0 0.0
    %404 = vmatprep.subr.mxu0 0.0
    %405 = vmatpush1.msra.mxu0 0.0
    %406 = vmatprep.subr.mxu0 0.0
    %407 = vmatpush1.msra.mxu0 0.0
    %408 = vmatprep.subr.mxu0 0.0
    %409 = vmatpush1.msra.mxu0 0.0
    %410 = vmatprep.subr.mxu0 0.0
    %411 = vmatpush1.msra.mxu0 0.0
    %412 = vmatprep.subr.mxu0 0.0
    %413 = vmatpush1.msra.mxu0 0.0
    %414 = vmatprep.subr.mxu0 0.0
    %415 = vmatpush1.msra.mxu0 0.0
    %416 = vmatprep.subr.mxu0 0.0
    %417 = vmatpush1.msra.mxu0 0.0
    %418 = vmatprep.subr.mxu0 0.0
    %419 = vmatpush1.msra.mxu0 0.0
    %420 = vmatprep.subr.mxu0 0.0
    %421 = vmatpush1.msra.mxu0 0.0
    %422 = vmatprep.subr.mxu0 0.0
    %423 = vmatpush1.msra.mxu0 0.0
    %424 = vmatprep.subr.mxu0 0.0
    %425 = vmatpush1.msra.mxu0 0.0
    %426 = vmatprep.mubr.f32.mxu0 0.0
    %427 = vmatmul.mubr.f32.gmra.mrb[0].mxu0 %v360
    %v428 = vpop.f32.mrb[0].mxu0
    %v429 = vadd.f32 %v356, %v428
    %v430 = vpop.f32.mrb[0].mxu0
    %431 = vdwg.mxu0
    %v432 = vmax.f32 %v429, 0.0
    %v433 = vld [vmem:[#allocation14] sm:$0xff]
    %v434 = vld [vmem:[#allocation14 + $0x8] sm:$0xff]
    %v435 = vld [vmem:[#allocation14 + $0x10] sm:$0xff]
    %v436 = vld [vmem:[#allocation14 + $0x18] sm:$0xff]
    %v437 = vld [vmem:[#allocation14 + $0x20] sm:$0xff]
    %v438 = vld [vmem:[#allocation14 + $0x28] sm:$0xff]
    %v439 = vld [vmem:[#allocation14 + $0x30] sm:$0xff]
    %v440 = vld [vmem:[#allocation14 + $0x38] sm:$0xff]
    %v441 = vld [vmem:[#allocation16] sm:$0x1]
    %v443 = vlaneseq
    %v444 = vshrl.u32 %v443, 7
    %v445 = vsub.s32 0, %v444
    %v446 = vrot.slane %v441, %v445
    %v449 = vsel %vm358, %v432, 0
    %451 = vmatprep.subr.mxu0 0.0
    %452 = vmatpush1.msra.mxu0 %v433
    %453 = vmatprep.subr.mxu0 0.0
    %454 = vmatpush1.msra.mxu0 %v434
    %455 = vmatprep.subr.mxu0 0.0
    %456 = vmatpush1.msra.mxu0 %v435
    %457 = vmatprep.subr.mxu0 0.0
    %458 = vmatpush1.msra.mxu0 %v436
    %459 = vmatprep.subr.mxu0 0.0
    %460 = vmatpush1.msra.mxu0 %v437
    %461 = vmatprep.subr.mxu0 0.0
    %462 = vmatpush1.msra.mxu0 %v438
    %463 = vmatprep.subr.mxu0 0.0
    %464 = vmatpush1.msra.mxu0 %v439
    %465 = vmatprep.subr.mxu0 0.0
    %466 = vmatpush1.msra.mxu0 %v440
    %467 = vmatprep.subr.mxu0 0.0
    %468 = vmatpush1.msra.mxu0 0.0
    %469 = vmatprep.subr.mxu0 0.0
    %470 = vmatpush1.msra.mxu0 0.0
    %471 = vmatprep.subr.mxu0 0.0
    %472 = vmatpush1.msra.mxu0 0.0
    %473 = vmatprep.subr.mxu0 0.0
    %474 = vmatpush1.msra.mxu0 0.0
    %475 = vmatprep.subr.mxu0 0.0
    %476 = vmatpush1.msra.mxu0 0.0
    %477 = vmatprep.subr.mxu0 0.0
    %478 = vmatpush1.msra.mxu0 0.0
    %479 = vmatprep.subr.mxu0 0.0
    %480 = vmatpush1.msra.mxu0 0.0
    %481 = vmatprep.subr.mxu0 0.0
    %482 = vmatpush1.msra.mxu0 0.0
    %483 = vmatprep.subr.mxu0 0.0
    %484 = vmatpush1.msra.mxu0 0.0
    %485 = vmatprep.subr.mxu0 0.0
    %486 = vmatpush1.msra.mxu0 0.0
    %487 = vmatprep.subr.mxu0 0.0
    %488 = vmatpush1.msra.mxu0 0.0
    %489 = vmatprep.subr.mxu0 0.0
    %490 = vmatpush1.msra.mxu0 0.0
    %491 = vmatprep.subr.mxu0 0.0
    %492 = vmatpush1.msra.mxu0 0.0
    %493 = vmatprep.subr.mxu0 0.0
    %494 = vmatpush1.msra.mxu0 0.0
    %495 = vmatprep.subr.mxu0 0.0
    %496 = vmatpush1.msra.mxu0 0.0
    %497 = vmatprep.subr.mxu0 0.0
    %498 = vmatpush1.msra.mxu0 0.0
    %499 = vmatprep.subr.mxu0 0.0
    %500 = vmatpush1.msra.mxu0 0.0
    %501 = vmatprep.subr.mxu0 0.0
    %502 = vmatpush1.msra.mxu0 0.0
    %503 = vmatprep.subr.mxu0 0.0
    %504 = vmatpush1.msra.mxu0 0.0
    %505 = vmatprep.subr.mxu0 0.0
    %506 = vmatpush1.msra.mxu0 0.0
    %507 = vmatprep.subr.mxu0 0.0
    %508 = vmatpush1.msra.mxu0 0.0
    %509 = vmatprep.subr.mxu0 0.0
    %510 = vmatpush1.msra.mxu0 0.0
    %511 = vmatprep.subr.mxu0 0.0
    %512 = vmatpush1.msra.mxu0 0.0
    %513 = vmatprep.subr.mxu0 0.0
    %514 = vmatpush1.msra.mxu0 0.0
    %515 = vmatprep.mubr.f32.mxu0 0.0
    %516 = vmatmul.mubr.f32.gmra.mrb[0].mxu0 %v449
    %v517 = vpop.f32.mrb[0].mxu0
    %v518 = vadd.f32 %v446, %v517
    %v519 = vpop.f32.mrb[0].mxu0
    %520 = vdwg.mxu0
    %v521 = vmax.f32 %v518, 0.0
    %v522 = vld [vmem:[#allocation17] sm:$0xff]
    %v523 = vld [vmem:[#allocation17 + $0x8] sm:$0xff]
    %v524 = vld [vmem:[#allocation17 + $0x10] sm:$0xff]
    %v525 = vld [vmem:[#allocation17 + $0x18] sm:$0xff]
    %v526 = vld [vmem:[#allocation17 + $0x20] sm:$0xff]
    %v527 = vld [vmem:[#allocation17 + $0x28] sm:$0xff]
    %v528 = vld [vmem:[#allocation17 + $0x30] sm:$0xff]
    %v529 = vld [vmem:[#allocation17 + $0x38] sm:$0xff]
    %v530 = vld [vmem:[#allocation19] sm:$0x1]
    %v532 = vlaneseq
    %v533 = vshrl.u32 %v532, 7
    %v534 = vsub.s32 0, %v533
    %v535 = vrot.slane %v530, %v534
    %v538 = vsel %vm358, %v521, 0
    %540 = vmatprep.subr.mxu0 0.0
    %541 = vmatpush1.msra.mxu0 %v522
    %542 = vmatprep.subr.mxu0 0.0
    %543 = vmatpush1.msra.mxu0 %v523
    %544 = vmatprep.subr.mxu0 0.0
    %545 = vmatpush1.msra.mxu0 %v524
    %546 = vmatprep.subr.mxu0 0.0
    %547 = vmatpush1.msra.mxu0 %v525
    %548 = vmatprep.subr.mxu0 0.0
    %549 = vmatpush1.msra.mxu0 %v526
    %550 = vmatprep.subr.mxu0 0.0
    %551 = vmatpush1.msra.mxu0 %v527
    %552 = vmatprep.subr.mxu0 0.0
    %553 = vmatpush1.msra.mxu0 %v528
    %554 = vmatprep.subr.mxu0 0.0
    %555 = vmatpush1.msra.mxu0 %v529
    %556 = vmatprep.subr.mxu0 0.0
    %557 = vmatpush1.msra.mxu0 0.0
    %558 = vmatprep.subr.mxu0 0.0
    %559 = vmatpush1.msra.mxu0 0.0
    %560 = vmatprep.subr.mxu0 0.0
    %561 = vmatpush1.msra.mxu0 0.0
    %562 = vmatprep.subr.mxu0 0.0
    %563 = vmatpush1.msra.mxu0 0.0
    %564 = vmatprep.subr.mxu0 0.0
    %565 = vmatpush1.msra.mxu0 0.0
    %566 = vmatprep.subr.mxu0 0.0
    %567 = vmatpush1.msra.mxu0 0.0
    %568 = vmatprep.subr.mxu0 0.0
    %569 = vmatpush1.msra.mxu0 0.0
    %570 = vmatprep.subr.mxu0 0.0
    %571 = vmatpush1.msra.mxu0 0.0
    %572 = vmatprep.subr.mxu0 0.0
    %573 = vmatpush1.msra.mxu0 0.0
    %574 = vmatprep.subr.mxu0 0.0
    %575 = vmatpush1.msra.mxu0 0.0
    %576 = vmatprep.subr.mxu0 0.0
    %577 = vmatpush1.msra.mxu0 0.0
    %578 = vmatprep.subr.mxu0 0.0
    %579 = vmatpush1.msra.mxu0 0.0
    %580 = vmatprep.subr.mxu0 0.0
    %581 = vmatpush1.msra.mxu0 0.0
    %582 = vmatprep.subr.mxu0 0.0
    %583 = vmatpush1.msra.mxu0 0.0
    %584 = vmatprep.subr.mxu0 0.0
    %585 = vmatpush1.msra.mxu0 0.0
    %586 = vmatprep.subr.mxu0 0.0
    %587 = vmatpush1.msra.mxu0 0.0
    %588 = vmatprep.subr.mxu0 0.0
    %589 = vmatpush1.msra.mxu0 0.0
    %590 = vmatprep.subr.mxu0 0.0
    %591 = vmatpush1.msra.mxu0 0.0
    %592 = vmatprep.subr.mxu0 0.0
    %593 = vmatpush1.msra.mxu0 0.0
    %594 = vmatprep.subr.mxu0 0.0
    %595 = vmatpush1.msra.mxu0 0.0
    %596 = vmatprep.subr.mxu0 0.0
    %597 = vmatpush1.msra.mxu0 0.0
    %598 = vmatprep.subr.mxu0 0.0
    %599 = vmatpush1.msra.mxu0 0.0
    %600 = vmatprep.subr.mxu0 0.0
    %601 = vmatpush1.msra.mxu0 0.0
    %602 = vmatprep.subr.mxu0 0.0
    %603 = vmatpush1.msra.mxu0 0.0
    %604 = vmatprep.mubr.f32.mxu0 0.0
    %605 = vmatmul.mubr.f32.gmra.mrb[0].mxu0 %v538
    %v606 = vpop.f32.mrb[0].mxu0
    %v607 = vadd.f32 %v535, %v606
    %v608 = vpop.f32.mrb[0].mxu0
    %609 = vdwg.mxu0
    %vm610 = vcmask 9216
    %611 = vst.msk [vmem:[#allocation20] sm:$0x3] %vm610, %v607
    // Predicated region
    $region90: #{tpu_custom_call.1} parent=1 // pred_check
      _
    $region91: #{tpu_custom_call.1} parent=1 // pred_check_branch
      %613 = sbr.rel (0) target = $region93
    $region92: #{tpu_custom_call.1} parent=1 // pred_region
      %s615 = ssub.s32 32, 32
      %616 = vsyncadd [#allocation4], %s615
      %s618 = sshll.u32 [#allocation20], 4
      %s619 = int_to_ptr.vmem [resolvable:$true] %s618
      %621 = dma.vmem_to_hbm [thread:$0]  %s619, 32, %s11, [#allocation4]
    $region93: #{tpu_custom_call.1} parent=1 // pred_fallthru
      _
    // Predicated region
    $region94: #{tpu_custom_call.1} parent=1 // pred_check
      _
    $region95: #{tpu_custom_call.1} parent=1 // pred_check_branch
      %623 = sbr.rel (0) target = $region97
    $region96: #{tpu_custom_call.1} parent=1 // pred_region
      %624 = dma.done [#allocation4], 32
    $region97: #{tpu_custom_call.1} parent=1 // pred_fallthru
      _
    %625 = vsyncpa [#allocation3], 1
    %626 = vsyncpa [#allocation6], 1
    %627 = vsyncpa [#allocation9], 1
    %628 = vsyncpa [#allocation12], 1
    %629 = vsyncpa [#allocation15], 1
    %630 = vsyncpa [#allocation18], 1
    %631 = vsyncpa [#allocation4], 1

</llo_original>
